<compile_context>
chip_gen: v7x
topology: tpu7x:2x2x1
jax: 0.10.0
libtpu: 0.0.40
codegen_flags: <defaults>
</compile_context>

<pallas_src>
import functools

import jax
import jax.numpy as jnp
from jax.experimental import pallas as pl
from jax.experimental.pallas import tpu as pltpu


def _round_up(n: int, m: int) -> int:
    return ((n + m - 1) // m) * m


# ----------------------------------------------------------------------------
# Kernel
# ----------------------------------------------------------------------------
def qnet_kernel(x_ref, w1_ref, b1_ref, w2_ref, b2_ref, o_ref):
    # fc1: x @ W1 + b1, then ReLU (MXU matmul + one broadcasted VPU add/max).
    h = jnp.dot(x_ref[...], w1_ref[...], preferred_element_type=jnp.float32)
    h = jnp.maximum(h + b1_ref[...], 0.0)
    # fc2: narrow (A-wide) result computed and stored directly — HBM writeback
    # is only A columns per row instead of a 128-lane padded slab.
    out = jnp.dot(h, w2_ref[...], preferred_element_type=jnp.float32)
    o_ref[...] = (out + b2_ref[...]).astype(o_ref.dtype)


# ----------------------------------------------------------------------------
# One-time parameter preparation (hoisted out of the per-call path)
# ----------------------------------------------------------------------------
def prepare_params(w1, b1, w2, b2, *, lane=128):
    """Pad the hidden dim to a lane multiple ONCE at init time.

    w1: (S, H); b1: (H,) or (1, H); w2: (H, A); b2: (A,) or (1, A).
    Returns (w1p, b1p, w2p, b2p) with the hidden dim padded to Hp = ceil128(H).
    The action dim A is intentionally NOT padded (output stays narrow in HBM).
    """
    S, H = w1.shape
    A = w2.shape[1]
    Hp = _round_up(H, lane)
    b1 = b1.reshape(1, -1)
    b2 = b2.reshape(1, -1)
    w1p = jnp.zeros((S, Hp), w1.dtype).at[:, :H].set(w1)
    b1p = jnp.zeros((1, Hp), b1.dtype).at[:, :H].set(b1)
    w2p = jnp.zeros((Hp, A), w2.dtype).at[:H, :].set(w2)
    return w1p, b1p, w2p, b2


# ----------------------------------------------------------------------------
# Batch tile selection (megacore-aware, padding-avoiding)
# ----------------------------------------------------------------------------
def _choose_tb(B: int, tb_max: int = 2048) -> int:
    """Pick a batch tile: multiple of 8, <= tb_max, grid >= 2 once B >= 16
    (so v7x's second TensorCore gets work), preferring an exact divisor of
    round_up(B, 8) so no tail padding is needed."""
    B8 = _round_up(B, 8)
    if B8 < 16:
        return B8  # single tiny tile; launch-overhead bound anyway.
    tb = min(tb_max, _round_up(B8 // 2, 8))
    # Look a bounded distance below `tb` for an exact divisor of B8.
    for cand in range(tb, 7, -8):
        if B8 % cand == 0:
            return cand
        if tb - cand >= 512:
            break
    return tb


# ----------------------------------------------------------------------------
# Forward
# ----------------------------------------------------------------------------
def qnet_forward(x, w1p, b1p, w2p, b2p, *, tb_max=2048):
    """x: (B, S); pre-padded params from prepare_params(). Returns (B, A)."""
    B, S = x.shape
    Hp = w1p.shape[1]
    A = w2p.shape[1]

    TB = _choose_tb(B, tb_max)
    Bp = _round_up(B, TB)
    if Bp != B:
        # Pad only the ragged tail (small concat), never rebuild the array.
        xp = jnp.concatenate([x, jnp.zeros((Bp - B, S), x.dtype)], axis=0)
    else:
        xp = x

    grid = (Bp // TB,)

    out = pl.pallas_call(
        qnet_kernel,
        out_shape=jax.ShapeDtypeStruct((Bp, A), x.dtype),
        grid=grid,
        in_specs=[
            pl.BlockSpec((TB, S), lambda i: (i, 0)),    # x: streamed per tile
            pl.BlockSpec((S, Hp), lambda i: (0, 0)),    # weights/biases stay
            pl.BlockSpec((1, Hp), lambda i: (0, 0)),    # resident in VMEM
            pl.BlockSpec((Hp, A), lambda i: (0, 0)),    # across the whole grid
            pl.BlockSpec((1, A), lambda i: (0, 0)),
        ],
        out_specs=pl.BlockSpec((TB, A), lambda i: (i, 0)),
        compiler_params=pltpu.CompilerParams(
            dimension_semantics=("parallel",)),          # v7x megacore sharding
    )(xp, w1p, b1p, w2p, b2p)

    return out if Bp == B else out[:B]


def reference_forward(x, w1, b1, w2, b2):
    h = jnp.maximum(x @ w1 + b1.reshape(1, -1), 0.0)
    return h @ w2 + b2.reshape(1, -1)


# ----------------------------------------------------------------------------
if __name__ == "__main__":
    # Small shapes consistent with the DQN module:
    #   state_dim=4, hidden_dim=32, action_dim=4
    state_dim, hidden_dim, action_dim = 4, 32, 4

    key = jax.random.PRNGKey(0)
    kx, k1, k2, k3, k4, kx2, kx3 = jax.random.split(key, 7)

    # Deterministic parameter init (synthetic weights, PyTorch-like scale).
    w1 = jax.random.uniform(k1, (state_dim, hidden_dim), jnp.float32,
                            -1.0 / state_dim ** 0.5, 1.0 / state_dim ** 0.5)
    b1 = jax.random.uniform(k2, (1, hidden_dim), jnp.float32,
                            -1.0 / state_dim ** 0.5, 1.0 / state_dim ** 0.5)
    w2 = jax.random.uniform(k3, (hidden_dim, action_dim), jnp.float32,
                            -1.0 / hidden_dim ** 0.5, 1.0 / hidden_dim ** 0.5)
    b2 = jax.random.uniform(k4, (1, action_dim), jnp.float32,
                            -1.0 / hidden_dim ** 0.5, 1.0 / hidden_dim ** 0.5)

    # Pad params ONCE (not per call).
    params = prepare_params(w1, b1, w2, b2)
    fwd = jax.jit(functools.partial(qnet_forward))

    # Case 1: tiny single-tile batch (B=8) — DQN inference shape.
    x = jax.random.normal(kx, (8, state_dim), dtype=jnp.float32)
    out = fwd(x, *params)
    jax.block_until_ready(out)
    ref = reference_forward(x, w1, b1, w2, b2)
    assert out.shape == (8, action_dim)
    assert jnp.allclose(out, ref, atol=1e-5, rtol=1e-5)

    # Case 2: multi-tile grid, batch divides the tile exactly (B=40).
    x_big = jax.random.normal(kx2, (40, state_dim), dtype=jnp.float32)
    out_big = fwd(x_big, *params)
    jax.block_until_ready(out_big)
    ref_big = reference_forward(x_big, w1, b1, w2, b2)
    assert out_big.shape == (40, action_dim)
    assert jnp.allclose(out_big, ref_big, atol=1e-5, rtol=1e-5)

    # Case 3: ragged batch needing tail padding (B=21 -> Bp=24, TB=8).
    x_odd = jax.random.normal(kx3, (21, state_dim), dtype=jnp.float32)
    out_odd = fwd(x_odd, *params)
    jax.block_until_ready(out_odd)
    ref_odd = reference_forward(x_odd, w1, b1, w2, b2)
    assert out_odd.shape == (21, action_dim)
    assert jnp.allclose(out_odd, ref_odd, atol=1e-5, rtol=1e-5)

    print("KERNEL_OK")
</pallas_src>

<mosaic_0001>
module attributes {stable_mosaic.version = 11 : i64} {
  func.func @qnet_kernel(%arg0: i32, %arg1: memref<8x4xf32, #tpu.memory_space<vmem>>, %arg2: memref<4x128xf32, #tpu.memory_space<vmem>>, %arg3: memref<1x128xf32, #tpu.memory_space<vmem>>, %arg4: memref<128x4xf32, #tpu.memory_space<vmem>>, %arg5: memref<1x4xf32, #tpu.memory_space<vmem>>, %arg6: memref<8x4xf32, #tpu.memory_space<vmem>>) attributes {dimension_semantics = [#tpu.dimension_semantics<parallel>], iteration_bounds = array<i64: 1>, scalar_prefetch = 0 : i64, scratch_operands = 0 : i64, tpu.core_type = #tpu.core_type<tc>, window_params = [{transform_indices = @transform_0, window_bounds = array<i64: 8, 4>}, {pipeline_mode = #tpu.pipeline_mode<synchronous>, transform_indices = @transform_1, window_bounds = array<i64: 4, 128>}, {pipeline_mode = #tpu.pipeline_mode<synchronous>, transform_indices = @transform_2, window_bounds = array<i64: 1, 128>}, {pipeline_mode = #tpu.pipeline_mode<synchronous>, transform_indices = @transform_3, window_bounds = array<i64: 128, 4>}, {pipeline_mode = #tpu.pipeline_mode<synchronous>, transform_indices = @transform_4, window_bounds = array<i64: 1, 4>}, {transform_indices = @transform_5, window_bounds = array<i64: 8, 4>}]} {
    %c0 = arith.constant 0 : index
    %c0_0 = arith.constant 0 : index
    %0 = vector.load %arg1[%c0, %c0_0] : memref<8x4xf32, #tpu.memory_space<vmem>>, vector<8x4xf32>
    %c0_1 = arith.constant 0 : index
    %c0_2 = arith.constant 0 : index
    %1 = vector.load %arg2[%c0_1, %c0_2] : memref<4x128xf32, #tpu.memory_space<vmem>>, vector<4x128xf32>
    %cst = arith.constant dense<0.000000e+00> : vector<8x128xf32>
    %2 = tpu.matmul %0, %1, %cst {dimension_numbers = #tpu.dot_dimension_numbers<[1], [0], [0], [1], [0, 0, 1, 1], [], []>} : vector<8x4xf32>, vector<4x128xf32>, vector<8x128xf32> -> vector<8x128xf32>
    %c0_3 = arith.constant 0 : index
    %c0_4 = arith.constant 0 : index
    %3 = vector.load %arg3[%c0_3, %c0_4] : memref<1x128xf32, #tpu.memory_space<vmem>>, vector<1x128xf32>
    %4 = vector.broadcast %3 : vector<1x128xf32> to vector<8x128xf32>
    %5 = arith.addf %2, %4 : vector<8x128xf32>
    %cst_5 = arith.constant 0.000000e+00 : f32
    %6 = vector.broadcast %cst_5 : f32 to vector<8x128xf32>
    %7 = arith.maximumf %5, %6 : vector<8x128xf32>
    %c0_6 = arith.constant 0 : index
    %c0_7 = arith.constant 0 : index
    %8 = vector.load %arg4[%c0_6, %c0_7] : memref<128x4xf32, #tpu.memory_space<vmem>>, vector<128x4xf32>
    %cst_8 = arith.constant dense<0.000000e+00> : vector<8x4xf32>
    %9 = tpu.matmul %7, %8, %cst_8 {dimension_numbers = #tpu.dot_dimension_numbers<[1], [0], [0], [1], [0, 0, 1, 1], [], []>} : vector<8x128xf32>, vector<128x4xf32>, vector<8x4xf32> -> vector<8x4xf32>
    %c0_9 = arith.constant 0 : index
    %c0_10 = arith.constant 0 : index
    %10 = vector.load %arg5[%c0_9, %c0_10] : memref<1x4xf32, #tpu.memory_space<vmem>>, vector<1x4xf32>
    %11 = vector.broadcast %10 : vector<1x4xf32> to vector<8x4xf32>
    %12 = arith.addf %9, %11 : vector<8x4xf32>
    %c0_11 = arith.constant 0 : index
    %c0_12 = arith.constant 0 : index
    %13 = vector.load %arg6[%c0_11, %c0_12] : memref<8x4xf32, #tpu.memory_space<vmem>>, vector<8x4xf32>
    tpu.vector_store %arg6[%c0_11, %c0_12], %12 {strides = array<i32>} : memref<8x4xf32, #tpu.memory_space<vmem>>, vector<8x4xf32>,
    return
  }
  func.func @transform_0(%arg0: i32) -> (i32, i32) {
    %c0_i32 = arith.constant 0 : i32
    %c0_i32_0 = arith.constant 0 : i32
    return %arg0, %c0_i32 : i32, i32
  }
  func.func @transform_1(%arg0: i32) -> (i32, i32) {
    %c0_i32 = arith.constant 0 : i32
    %c0_i32_0 = arith.constant 0 : i32
    %c0_i32_1 = arith.constant 0 : i32
    return %c0_i32, %c0_i32_0 : i32, i32
  }
  func.func @transform_2(%arg0: i32) -> (i32, i32) {
    %c0_i32 = arith.constant 0 : i32
    %c0_i32_0 = arith.constant 0 : i32
    %c0_i32_1 = arith.constant 0 : i32
    return %c0_i32, %c0_i32_0 : i32, i32
  }
  func.func @transform_3(%arg0: i32) -> (i32, i32) {
    %c0_i32 = arith.constant 0 : i32
    %c0_i32_0 = arith.constant 0 : i32
    %c0_i32_1 = arith.constant 0 : i32
    return %c0_i32, %c0_i32_0 : i32, i32
  }
  func.func @transform_4(%arg0: i32) -> (i32, i32) {
    %c0_i32 = arith.constant 0 : i32
    %c0_i32_0 = arith.constant 0 : i32
    %c0_i32_1 = arith.constant 0 : i32
    return %c0_i32, %c0_i32_0 : i32, i32
  }
  func.func @transform_5(%arg0: i32) -> (i32, i32) {
    %c0_i32 = arith.constant 0 : i32
    %c0_i32_0 = arith.constant 0 : i32
    return %arg0, %c0_i32 : i32, i32
  }
}

</mosaic_0001>

<llo_original>
// kernel: qnet_forward.1
$region0: #{qnet_forward.1}
  #allocation0 [shape = 'u32[]', space=smem, size = 0x4, offset = 0x4, fixed_abs, tag = 'smem constant byte address 0x4 - core index']
  #allocation1 [shape = 'u32[144,128]{1,0:T(1,128)}', space=vmem, size = 0x12000, scoped, tag = 'internal scratch']
  %s0 = inlined_call_operand.vmem [shape: f32[8,4], index: 0, kind: input, shape index: {}]
  %s1 = inlined_call_operand.vmem [shape: f32[4,128], index: 1, kind: input, shape index: {}]
  %s2 = inlined_call_operand.vmem [shape: f32[1,128], index: 2, kind: input, shape index: {}]
  %s3 = inlined_call_operand.vmem [shape: f32[128,4], index: 3, kind: input, shape index: {}]
  %s4 = inlined_call_operand.vmem [shape: f32[1,4], index: 4, kind: input, shape index: {}]
  %s5 = inlined_call_operand.vmem [shape: f32[8,4], index: 5, kind: output, shape index: {}]
  %s6 = sld [smem:[#allocation0]]
  $region30: #{qnet_forward.1} parent=0
    _
  %s8 = ssub.s32 1, %s6
  %s9 = scalar_select 0, %s8, %s6
  // Predicated region
  $region2: #{qnet_forward.1} parent=0 // pred_check
    _
  $region3: #{qnet_forward.1} parent=0 // pred_check_branch
    %11 = sbr.rel (0) target = $region5
  $region4: #{qnet_forward.1} parent=0 // pred_region
    _
  $region5: #{qnet_forward.1} parent=0 // pred_fallthru
    _
  // Predicated region
  $region6: #{qnet_forward.1} parent=0 // pred_check
    _
  $region7: #{qnet_forward.1} parent=0 // pred_check_branch
    %13 = sbr.rel (0) target = $region9
  $region8: #{qnet_forward.1} parent=0 // pred_region
    _
  $region9: #{qnet_forward.1} parent=0 // pred_fallthru
    _
  // Predicated region
  $region10: #{qnet_forward.1} parent=0 // pred_check
    _
  $region11: #{qnet_forward.1} parent=0 // pred_check_branch
    %15 = sbr.rel (0) target = $region13
  $region12: #{qnet_forward.1} parent=0 // pred_region
    _
  $region13: #{qnet_forward.1} parent=0 // pred_fallthru
    _
  // Predicated region
  $region14: #{qnet_forward.1} parent=0 // pred_check
    _
  $region15: #{qnet_forward.1} parent=0 // pred_check_branch
    %17 = sbr.rel (0) target = $region17
  $region16: #{qnet_forward.1} parent=0 // pred_region
    _
  $region17: #{qnet_forward.1} parent=0 // pred_fallthru
    _
  // Predicated region
  $region18: #{qnet_forward.1} parent=0 // pred_check
    _
  $region19: #{qnet_forward.1} parent=0 // pred_check_branch
    %19 = sbr.rel (0) target = $region21
  $region20: #{qnet_forward.1} parent=0 // pred_region
    _
  $region21: #{qnet_forward.1} parent=0 // pred_fallthru
    _
  %v20 = vld [vmem:[%s0] sm:$0xff]
  %v21 = vld [vmem:[%s1] sm:$0xf]
  %v22 = vld [vmem:[%s2] sm:$0x1]
  %v24 = vlaneseq
  %v25 = vshrl.u32 %v24, 7
  %v26 = vsub.s32 0, %v25
  %v27 = vrot.slane %v22, %v26
  %vm29 = vcmask 31744
  %v31 = vsel %vm29, %v20, 0
  %vm33 = vcmask 1043456
  %v35 = vsel %vm33, %v21, 0
  %37 = vmatprep.subr.mxu0 0.0
  %38 = vmatpush1.msra.mxu0 %v35
  %39 = vmatprep.subr.mxu0 0.0
  %40 = vmatpush1.msra.mxu0 0.0
  %41 = vmatprep.subr.mxu0 0.0
  %42 = vmatpush1.msra.mxu0 0.0
  %43 = vmatprep.subr.mxu0 0.0
  %44 = vmatpush1.msra.mxu0 0.0
  %45 = vmatprep.subr.mxu0 0.0
  %46 = vmatpush1.msra.mxu0 0.0
  %47 = vmatprep.subr.mxu0 0.0
  %48 = vmatpush1.msra.mxu0 0.0
  %49 = vmatprep.subr.mxu0 0.0
  %50 = vmatpush1.msra.mxu0 0.0
  %51 = vmatprep.subr.mxu0 0.0
  %52 = vmatpush1.msra.mxu0 0.0
  %53 = vmatprep.subr.mxu0 0.0
  %54 = vmatpush1.msra.mxu0 0.0
  %55 = vmatprep.subr.mxu0 0.0
  %56 = vmatpush1.msra.mxu0 0.0
  %57 = vmatprep.subr.mxu0 0.0
  %58 = vmatpush1.msra.mxu0 0.0
  %59 = vmatprep.subr.mxu0 0.0
  %60 = vmatpush1.msra.mxu0 0.0
  %61 = vmatprep.subr.mxu0 0.0
  %62 = vmatpush1.msra.mxu0 0.0
  %63 = vmatprep.subr.mxu0 0.0
  %64 = vmatpush1.msra.mxu0 0.0
  %65 = vmatprep.subr.mxu0 0.0
  %66 = vmatpush1.msra.mxu0 0.0
  %67 = vmatprep.subr.mxu0 0.0
  %68 = vmatpush1.msra.mxu0 0.0
  %69 = vmatprep.subr.mxu0 0.0
  %70 = vmatpush1.msra.mxu0 0.0
  %71 = vmatprep.subr.mxu0 0.0
  %72 = vmatpush1.msra.mxu0 0.0
  %73 = vmatprep.subr.mxu0 0.0
  %74 = vmatpush1.msra.mxu0 0.0
  %75 = vmatprep.subr.mxu0 0.0
  %76 = vmatpush1.msra.mxu0 0.0
  %77 = vmatprep.subr.mxu0 0.0
  %78 = vmatpush1.msra.mxu0 0.0
  %79 = vmatprep.subr.mxu0 0.0
  %80 = vmatpush1.msra.mxu0 0.0
  %81 = vmatprep.subr.mxu0 0.0
  %82 = vmatpush1.msra.mxu0 0.0
  %83 = vmatprep.subr.mxu0 0.0
  %84 = vmatpush1.msra.mxu0 0.0
  %85 = vmatprep.subr.mxu0 0.0
  %86 = vmatpush1.msra.mxu0 0.0
  %87 = vmatprep.subr.mxu0 0.0
  %88 = vmatpush1.msra.mxu0 0.0
  %89 = vmatprep.subr.mxu0 0.0
  %90 = vmatpush1.msra.mxu0 0.0
  %91 = vmatprep.subr.mxu0 0.0
  %92 = vmatpush1.msra.mxu0 0.0
  %93 = vmatprep.subr.mxu0 0.0
  %94 = vmatpush1.msra.mxu0 0.0
  %95 = vmatprep.subr.mxu0 0.0
  %96 = vmatpush1.msra.mxu0 0.0
  %97 = vmatprep.subr.mxu0 0.0
  %98 = vmatpush1.msra.mxu0 0.0
  %99 = vmatprep.subr.mxu0 0.0
  %100 = vmatpush1.msra.mxu0 0.0
  %101 = vmatprep.mubr.f32.mxu0 0.0
  %102 = vmatmul.mubr.f32.gmra.mrb[0].mxu0 %v31
  %v103 = vpop.f32.mrb[0].mxu0
  %v104 = vadd.f32 %v27, %v103
  %v105 = vpop.f32.mrb[0].mxu0
  %106 = vdwg.mxu0
  %v107 = vmax.f32 %v104, 0.0
  %v108 = vld [vmem:[%s3] sm:$0xff]
  %v109 = vld [vmem:[%s3 + $0x8] sm:$0xff]
  %v110 = vld [vmem:[%s3 + $0x10] sm:$0xff]
  %v111 = vld [vmem:[%s3 + $0x18] sm:$0xff]
  %v112 = vld [vmem:[%s3 + $0x20] sm:$0xff]
  %v113 = vld [vmem:[%s3 + $0x28] sm:$0xff]
  %v114 = vld [vmem:[%s3 + $0x30] sm:$0xff]
  %v115 = vld [vmem:[%s3 + $0x38] sm:$0xff]
  %v116 = vld [vmem:[%s3 + $0x40] sm:$0xff]
  %v117 = vld [vmem:[%s3 + $0x48] sm:$0xff]
  %v118 = vld [vmem:[%s3 + $0x50] sm:$0xff]
  %v119 = vld [vmem:[%s3 + $0x58] sm:$0xff]
  %v120 = vld [vmem:[%s3 + $0x60] sm:$0xff]
  %v121 = vld [vmem:[%s3 + $0x68] sm:$0xff]
  %v122 = vld [vmem:[%s3 + $0x70] sm:$0xff]
  %v123 = vld [vmem:[%s3 + $0x78] sm:$0xff]
  %v124 = vld [vmem:[%s4] sm:$0x1]
  %v126 = vlaneseq
  %v127 = vshrl.u32 %v126, 7
  %v128 = vsub.s32 0, %v127
  %v129 = vrot.slane %v124, %v128
  %131 = vmatprep.subr.mxu0 0.0
  %132 = vmatpush1.msra.mxu0 %v108
  %133 = vmatprep.subr.mxu0 0.0
  %134 = vmatpush1.msra.mxu0 %v109
  %135 = vmatprep.subr.mxu0 0.0
  %136 = vmatpush1.msra.mxu0 %v110
  %137 = vmatprep.subr.mxu0 0.0
  %138 = vmatpush1.msra.mxu0 %v111
  %139 = vmatprep.subr.mxu0 0.0
  %140 = vmatpush1.msra.mxu0 %v112
  %141 = vmatprep.subr.mxu0 0.0
  %142 = vmatpush1.msra.mxu0 %v113
  %143 = vmatprep.subr.mxu0 0.0
  %144 = vmatpush1.msra.mxu0 %v114
  %145 = vmatprep.subr.mxu0 0.0
  %146 = vmatpush1.msra.mxu0 %v115
  %147 = vmatprep.subr.mxu0 0.0
  %148 = vmatpush1.msra.mxu0 %v116
  %149 = vmatprep.subr.mxu0 0.0
  %150 = vmatpush1.msra.mxu0 %v117
  %151 = vmatprep.subr.mxu0 0.0
  %152 = vmatpush1.msra.mxu0 %v118
  %153 = vmatprep.subr.mxu0 0.0
  %154 = vmatpush1.msra.mxu0 %v119
  %155 = vmatprep.subr.mxu0 0.0
  %156 = vmatpush1.msra.mxu0 %v120
  %157 = vmatprep.subr.mxu0 0.0
  %158 = vmatpush1.msra.mxu0 %v121
  %159 = vmatprep.subr.mxu0 0.0
  %160 = vmatpush1.msra.mxu0 %v122
  %161 = vmatprep.subr.mxu0 0.0
  %162 = vmatpush1.msra.mxu0 %v123
  %163 = vmatprep.subr.mxu0 0.0
  %164 = vmatpush1.msra.mxu0 0.0
  %165 = vmatprep.subr.mxu0 0.0
  %166 = vmatpush1.msra.mxu0 0.0
  %167 = vmatprep.subr.mxu0 0.0
  %168 = vmatpush1.msra.mxu0 0.0
  %169 = vmatprep.subr.mxu0 0.0
  %170 = vmatpush1.msra.mxu0 0.0
  %171 = vmatprep.subr.mxu0 0.0
  %172 = vmatpush1.msra.mxu0 0.0
  %173 = vmatprep.subr.mxu0 0.0
  %174 = vmatpush1.msra.mxu0 0.0
  %175 = vmatprep.subr.mxu0 0.0
  %176 = vmatpush1.msra.mxu0 0.0
  %177 = vmatprep.subr.mxu0 0.0
  %178 = vmatpush1.msra.mxu0 0.0
  %179 = vmatprep.subr.mxu0 0.0
  %180 = vmatpush1.msra.mxu0 0.0
  %181 = vmatprep.subr.mxu0 0.0
  %182 = vmatpush1.msra.mxu0 0.0
  %183 = vmatprep.subr.mxu0 0.0
  %184 = vmatpush1.msra.mxu0 0.0
  %185 = vmatprep.subr.mxu0 0.0
  %186 = vmatpush1.msra.mxu0 0.0
  %187 = vmatprep.subr.mxu0 0.0
  %188 = vmatpush1.msra.mxu0 0.0
  %189 = vmatprep.subr.mxu0 0.0
  %190 = vmatpush1.msra.mxu0 0.0
  %191 = vmatprep.subr.mxu0 0.0
  %192 = vmatpush1.msra.mxu0 0.0
  %193 = vmatprep.subr.mxu0 0.0
  %194 = vmatpush1.msra.mxu0 0.0
  %195 = vmatprep.mubr.f32.mxu0 0.0
  %196 = vmatmul.mubr.f32.gmra.mrb[0].mxu0 %v107
  %v197 = vpop.f32.mrb[0].mxu0
  %v198 = vadd.f32 %v129, %v197
  %v199 = vpop.f32.mrb[0].mxu0
  %200 = vdwg.mxu0
  %201 = vst.msk [vmem:[%s5] sm:$0xff] %vm29, %v198
  // Predicated region
  $region22: #{qnet_forward.1} parent=0 // pred_check
    _
  $region23: #{qnet_forward.1} parent=0 // pred_check_branch
    %203 = sbr.rel (0) target = $region25
  $region24: #{qnet_forward.1} parent=0 // pred_region
    _
  $region25: #{qnet_forward.1} parent=0 // pred_fallthru
    _
  // Predicated region
  $region26: #{qnet_forward.1} parent=0 // pred_check
    _
  $region27: #{qnet_forward.1} parent=0 // pred_check_branch
    %205 = sbr.rel (0) target = $region29
  $region28: #{qnet_forward.1} parent=0 // pred_region
    _
  $region29: #{qnet_forward.1} parent=0 // pred_fallthru
    _

</llo_original>
